<compile_context>
chip_gen: v6e
topology: v6e:2x2x1
jax: 0.10.0
libtpu: 0.0.40
codegen_flags: <defaults>
</compile_context>

<pallas_src>
import functools

import jax
import jax.numpy as jnp
from jax import lax
from jax.experimental import pallas as pl
from jax.experimental.pallas import tpu as pltpu

_LANE = 128
_MIB = 1024 * 1024


def _round_up(x, m):
    return ((x + m - 1) // m) * m


def _vmem_capacity_bytes():
    # Generation-aware VMEM capacity; conservative fallback = v7x (64 MiB/TC).
    try:
        return int(pltpu.get_tpu_info().vmem_capacity_bytes)
    except Exception:
        return 64 * _MIB


def _single_block_kernel(x_ref, w_ref, b_ref, o_ref):
    # x_ref: [B, F] VMEM, w_ref: [1, F] VMEM, b_ref: [1] SMEM, o_ref: [1, B] VMEM
    x = x_ref[...]
    w = w_ref[...].astype(x.dtype)                     # multiply in native dtype
    z = jnp.sum((x * w).astype(jnp.float32), axis=-1)  # f32 accumulate
    z = z + b_ref[0]                                    # scalar bias from SMEM
    o_ref[...] = jax.nn.sigmoid(z)[None, :].astype(o_ref.dtype)


def _tiled_kernel(x_ref, w_ref, b_ref, o_ref, acc_ref, *, batch, feat, tb, tf):
    # Grid: (batch tiles [parallel], feature tiles [arbitrary / reduction last]).
    # x_ref: [tb, tf], w_ref: [1, tf], b_ref: [1] SMEM,
    # o_ref: [1, tb] (lane-dense), acc_ref: [1, tb] f32 VMEM scratch.
    i = pl.program_id(0)
    k = pl.program_id(1)
    nk = pl.num_programs(1)

    @pl.when(k == 0)
    def _():
        acc_ref[...] = jnp.zeros_like(acc_ref)

    x = x_ref[...]
    w = w_ref[...].astype(x.dtype)
    prod = (x * w).astype(jnp.float32)
    if feat % tf != 0:
        # Partial final feature tile: zero out padded / garbage columns.
        col = lax.broadcasted_iota(jnp.int32, prod.shape, 1) + k * tf
        prod = jnp.where(col < feat, prod, 0.0)
    acc_ref[...] += jnp.sum(prod, axis=-1)[None, :]

    @pl.when(k == nk - 1)
    def _():
        out = jax.nn.sigmoid(acc_ref[...] + b_ref[0])
        if batch % tb != 0:
            # Hygiene mask for the partial final batch tile (Pallas drops the
            # OOB lanes on writeback anyway).
            lane = lax.broadcasted_iota(jnp.int32, out.shape, 1) + i * tb
            out = jnp.where(lane < batch, out, 0.0)
        o_ref[...] = out.astype(o_ref.dtype)


def review_classifier_forward(x, weight, bias, *, batch_tile=None, feature_tile=None):
    """Pallas forward of ReviewClassifier: sigmoid(x @ weight.T + bias).

    x: [B, F] (f32 or bf16), weight: [1, F] (torch layout), bias: [1].
    Returns [B, 1] f32.
    """
    B, F = x.shape
    assert weight.shape == (1, F)
    b = jnp.asarray(bias).reshape(1).astype(jnp.float32)

    itemsize = x.dtype.itemsize
    vmem_cap = _vmem_capacity_bytes()
    vmem_limit = int(vmem_cap * 3 // 4)       # explicit scoped-VMEM budget
    x_buf_target = vmem_limit // 3            # per-buffer x tile (2 bufs + slack)
    eff_row_bytes = max(F, _LANE) * itemsize  # lane-padded row width in VMEM

    # ---- Path A: whole problem in one block (no grid, no per-step overhead) ----
    if (batch_tile is None and feature_tile is None
            and _round_up(B, 8) * eff_row_bytes <= x_buf_target):
        out = pl.pallas_call(
            _single_block_kernel,
            out_shape=jax.ShapeDtypeStruct((1, B), jnp.float32),
            in_specs=[
                pl.BlockSpec(memory_space=pltpu.MemorySpace.VMEM),   # x
                pl.BlockSpec(memory_space=pltpu.MemorySpace.VMEM),   # weight
                pl.BlockSpec(memory_space=pltpu.MemorySpace.SMEM),   # bias
            ],
            out_specs=pl.BlockSpec(memory_space=pltpu.MemorySpace.VMEM),
            compiler_params=pltpu.CompilerParams(vmem_limit_bytes=vmem_limit),
        )(x, weight, b)
        return out.reshape(B, 1)

    # ---- Path B: 2-D grid (batch tiles x feature tiles), no x copy in HBM ----
    # Feature tile: full F when a minimal 128-row tile fits the byte budget,
    # otherwise tile F (reduction axis, last in grid) in multiples of 128.
    if feature_tile is not None:
        tf = min(feature_tile, F)
    elif _LANE * eff_row_bytes <= x_buf_target:
        tf = F
    else:
        tf = max(_LANE, (x_buf_target // (_LANE * itemsize)) // _LANE * _LANE)

    eff_tf_bytes = max(tf, _LANE) * itemsize
    if batch_tile is not None:
        tb = batch_tile
    else:
        tb = max(_LANE, (x_buf_target // eff_tf_bytes) // _LANE * _LANE)
    tb = min(tb, B)   # a block covering the full batch dim is always legal

    grid = (pl.cdiv(B, tb), pl.cdiv(F, tf))
    kernel = functools.partial(_tiled_kernel, batch=B, feat=F, tb=tb, tf=tf)

    out = pl.pallas_call(
        kernel,
        out_shape=jax.ShapeDtypeStruct((1, B), jnp.float32),
        grid=grid,
        in_specs=[
            pl.BlockSpec((tb, tf), lambda i, k: (i, k)),            # x tile (streamed)
            pl.BlockSpec((1, tf), lambda i, k: (0, k)),             # weight tile (tiny)
            pl.BlockSpec(memory_space=pltpu.MemorySpace.SMEM),      # bias scalar
        ],
        out_specs=pl.BlockSpec((1, tb), lambda i, k: (0, i)),       # lane-dense out
        scratch_shapes=[pltpu.VMEM((1, tb), jnp.float32)],          # f32 accumulator
        compiler_params=pltpu.CompilerParams(
            dimension_semantics=("parallel", "arbitrary"),          # reduction last
            vmem_limit_bytes=vmem_limit,
        ),
    )(x, weight, b)
    return out[0, :B].reshape(B, 1)


def _reference(x, weight, bias):
    # Elementwise f32 reference (avoids MXU precision differences).
    return jax.nn.sigmoid(jnp.sum(x.astype(jnp.float32) * weight, axis=-1,
                                  keepdims=True) + bias)


if __name__ == "__main__":
    key = jax.random.PRNGKey(0)
    kx, kw, kb, kx2, kx3, kw3, kb3 = jax.random.split(key, 7)

    # Small shapes consistent with the module.
    B, n_feature = 8, 32
    x = jax.random.normal(kx, (B, n_feature), dtype=jnp.float32)
    bound = 1.0 / jnp.sqrt(jnp.float32(n_feature))
    weight = jax.random.uniform(kw, (1, n_feature), jnp.float32, -bound, bound)
    bias = jax.random.uniform(kb, (1,), jnp.float32, -bound, bound)

    # Path A (single block, no grid).
    out = review_classifier_forward(x, weight, bias)
    jax.block_until_ready(out)
    assert out.shape == (B, 1)
    assert jnp.allclose(out, _reference(x, weight, bias), atol=1e-5, rtol=1e-5), \
        "mismatch vs reference (single block)"

    # Path B: batch grid with a non-divisible tail block (no pad copy).
    B2 = 300
    x2 = jax.random.normal(kx2, (B2, n_feature), dtype=jnp.float32)
    out2 = review_classifier_forward(x2, weight, bias, batch_tile=128)
    jax.block_until_ready(out2)
    assert out2.shape == (B2, 1)
    assert jnp.allclose(out2, _reference(x2, weight, bias), atol=1e-5, rtol=1e-5), \
        "mismatch vs reference (batch-tiled, tail block)"

    # Path B: feature-reduction grid with a partial final feature tile.
    B3, F3 = 256, 160
    bound3 = 1.0 / jnp.sqrt(jnp.float32(F3))
    x3 = jax.random.normal(kx3, (B3, F3), dtype=jnp.float32)
    w3 = jax.random.uniform(kw3, (1, F3), jnp.float32, -bound3, bound3)
    b3 = jax.random.uniform(kb3, (1,), jnp.float32, -bound3, bound3)
    out3 = review_classifier_forward(x3, w3, b3, batch_tile=128, feature_tile=128)
    jax.block_until_ready(out3)
    assert out3.shape == (B3, 1)
    assert jnp.allclose(out3, _reference(x3, w3, b3), atol=1e-5, rtol=1e-5), \
        "mismatch vs reference (feature-tiled)"

    print("KERNEL_OK")
</pallas_src>

<mosaic_0001>
module attributes {stable_mosaic.version = 11 : i64} {
  func.func @_single_block_kernel(%arg0: memref<8x32xf32, #tpu.memory_space<vmem>>, %arg1: memref<1x32xf32, #tpu.memory_space<vmem>>, %arg2: memref<1xf32, #tpu.memory_space<smem>>, %arg3: memref<1x8xf32, #tpu.memory_space<vmem>>) attributes {dimension_semantics = [], scalar_prefetch = 0 : i64, scratch_operands = 0 : i64, tpu.core_type = #tpu.core_type<tc>} {
    %c0 = arith.constant 0 : index
    %c0_0 = arith.constant 0 : index
    %0 = vector.load %arg0[%c0, %c0_0] : memref<8x32xf32, #tpu.memory_space<vmem>>, vector<8x32xf32>
    %c0_1 = arith.constant 0 : index
    %c0_2 = arith.constant 0 : index
    %1 = vector.load %arg1[%c0_1, %c0_2] : memref<1x32xf32, #tpu.memory_space<vmem>>, vector<1x32xf32>
    %2 = vector.broadcast %1 : vector<1x32xf32> to vector<8x32xf32>
    %3 = arith.mulf %0, %2 : vector<8x32xf32>
    %cst = arith.constant dense<0.000000e+00> : vector<8xf32>
    %4 = vector.multi_reduction <add>, %3, %cst [1] : vector<8x32xf32> to vector<8xf32>
    %c0_3 = arith.constant 0 : index
    %5 = memref.load %arg2[%c0_3] : memref<1xf32, #tpu.memory_space<smem>>
    %6 = vector.broadcast %5 : f32 to vector<8xf32>
    %7 = arith.addf %4, %6 : vector<8xf32>
    %8 = arith.negf %7 : vector<8xf32>
    %9 = math.exp %8 : vector<8xf32>
    %cst_4 = arith.constant 1.000000e+00 : f32
    %10 = vector.broadcast %cst_4 : f32 to vector<8xf32>
    %11 = arith.addf %10, %9 : vector<8xf32>
    %12 = arith.divf %10, %11 : vector<8xf32>
    %13 = vector.shape_cast %12 : vector<8xf32> to vector<1x8xf32>
    %c0_5 = arith.constant 0 : index
    %c0_6 = arith.constant 0 : index
    %14 = vector.load %arg3[%c0_5, %c0_6] : memref<1x8xf32, #tpu.memory_space<vmem>>, vector<1x8xf32>
    tpu.vector_store %arg3[%c0_5, %c0_6], %13 {strides = array<i32>} : memref<1x8xf32, #tpu.memory_space<vmem>>, vector<1x8xf32>,
    return
  }
}

</mosaic_0001>

<llo_original>
// kernel: tpu_custom_call.1
$region0: #{tpu_custom_call.1}
  #allocation0 [shape = 'u32[]', space=smem, size = 0x4, offset = 0x4, fixed_abs, tag = 'smem constant byte address 0x4 - core index']
  #allocation1 [shape = 'u32[144,128]{1,0:T(1,128)}', space=vmem, size = 0x12000, scoped, tag = 'internal scratch']
  #allocation2 [shape = 'f32[1]{0:T(128)S(6)}', space=smem, size = 0x200, scoped, tag = 'scoped memory for tpu_custom_call.1']
  %s0 = inlined_call_operand.hbm [shape: f32[8,32], index: 0, kind: input, shape index: {}]
  %s1 = inlined_call_operand.vmem [shape: f32[1,32], index: 1, kind: input, shape index: {}]
  %s2 = inlined_call_operand.<no memory space> [shape: f32[1], index: 2, kind: input, shape index: {}]
  %s3 = inlined_call_operand.hbm [shape: f32[1,8], index: 3, kind: output, shape index: {}]
  %s4 = sld [smem:[#allocation0]]
  $region26: #{tpu_custom_call.1} parent=0
    _
  %s6 = ssub.s32 1, %s4
  %s7 = scalar_select 0, %s6, %s4
  %8 = sst [smem:[#allocation2]] %s2
  $region1: #{tpu_custom_call.1} parent=0
    #allocation3 [shape = 'u8[4096]{0}', space=vmem, size = 0x1000, scoped, tag = 'input window, operand 0, single buffered']
    #allocation4 [shape = 's32[1]{0}', space=sflag, size = 0x4, scoped, tag = 'scoped memory for tpu_custom_call.1']
    #allocation5 [shape = 's32[1]{0}', space=sflag, size = 0x4, scoped, tag = 'scoped memory for tpu_custom_call.1']
    #allocation6 [shape = 'u8[512]{0}', space=vmem, size = 0x400, scoped, tag = 'output window, operand 0, single buffered']
    %9 = vsyncpa [#allocation4], 0
    %10 = vsyncpa [#allocation5], 0
    // Predicated region
    $region2: #{tpu_custom_call.1} parent=1 // pred_check
      _
    $region3: #{tpu_custom_call.1} parent=1 // pred_check_branch
      %12 = sbr.rel (0) target = $region5
    $region4: #{tpu_custom_call.1} parent=1 // pred_region
      %s14 = ssub.s32 128, 128
      %15 = vsyncadd [#allocation4], %s14
      %s17 = sshll.u32 [#allocation3], 4
      %s18 = int_to_ptr.vmem [resolvable:$true] %s17
      %20 = dma.hbm_to_vmem [thread:$0]  %s0, 128, %s18, [#allocation4]
    $region5: #{tpu_custom_call.1} parent=1 // pred_fallthru
      _
    // Predicated region
    $region6: #{tpu_custom_call.1} parent=1 // pred_check
      _
    $region7: #{tpu_custom_call.1} parent=1 // pred_check_branch
      %22 = sbr.rel (0) target = $region9
    $region8: #{tpu_custom_call.1} parent=1 // pred_region
      _
    $region9: #{tpu_custom_call.1} parent=1 // pred_fallthru
      _
    // Predicated region
    $region10: #{tpu_custom_call.1} parent=1 // pred_check
      _
    $region11: #{tpu_custom_call.1} parent=1 // pred_check_branch
      %24 = sbr.rel (0) target = $region13
    $region12: #{tpu_custom_call.1} parent=1 // pred_region
      _
    $region13: #{tpu_custom_call.1} parent=1 // pred_fallthru
      _
    // Predicated region
    $region14: #{tpu_custom_call.1} parent=1 // pred_check
      _
    $region15: #{tpu_custom_call.1} parent=1 // pred_check_branch
      %26 = sbr.rel (0) target = $region17
    $region16: #{tpu_custom_call.1} parent=1 // pred_region
      %27 = dma.done [#allocation4], 128
    $region17: #{tpu_custom_call.1} parent=1 // pred_fallthru
      _
    %v28 = vld [vmem:[#allocation3] sm:$0xff]
    %v29 = vld [vmem:[%s1] sm:$0x1]
    %v31 = vlaneseq
    %v32 = vshrl.u32 %v31, 7
    %v33 = vsub.s32 0, %v32
    %v34 = vrot.slane %v29, %v33
    %v36 = vmul.f32 %v28, %v34
    %vm37 = vcmask 261120
    %v38 = vsel %vm37, %v36, 0.0
    %39 = vadd.xlane.f32.xlu0 %v38
    %v40 = vpop.xlane.xlu0 %39
    %s41 = sld [smem:[#allocation2]]
    %v42 = vstv %s41
    %v43 = vadd.f32 %v40, %v42
    %v44 = vxor.u32 %v43, 2147483648
    %v45 = vmul.f32 %v44, 1.442695
    %v46 = vpow.pop %v45
    %v47 = vadd.f32 %v46, 1.0
    %v48 = vrcp.pop %v47
    %v49 = vmul.f32 1.0, %v48
    %v51 = vlaneseq
    %v52 = vand.u32 %v51, 127
    %v53 = vlaneseq
    %v54 = vshrl.u32 %v53, 7
    %v55 = vsub.s32 %v52, %v54
    %v56 = vrot.slane %v49, %v55
    %vm58 = vcmask 57344
    %59 = vst.msk [vmem:[#allocation6] sm:$0x1] %vm58, %v56
    // Predicated region
    $region18: #{tpu_custom_call.1} parent=1 // pred_check
      _
    $region19: #{tpu_custom_call.1} parent=1 // pred_check_branch
      %61 = sbr.rel (0) target = $region21
    $region20: #{tpu_custom_call.1} parent=1 // pred_region
      %s63 = ssub.s32 16, 16
      %64 = vsyncadd [#allocation5], %s63
      %s66 = sshll.u32 [#allocation6], 4
      %s67 = int_to_ptr.vmem [resolvable:$true] %s66
      %69 = dma.vmem_to_hbm [thread:$0]  %s67, 16, %s3, [#allocation5]
    $region21: #{tpu_custom_call.1} parent=1 // pred_fallthru
      _
    // Predicated region
    $region22: #{tpu_custom_call.1} parent=1 // pred_check
      _
    $region23: #{tpu_custom_call.1} parent=1 // pred_check_branch
      %71 = sbr.rel (0) target = $region25
    $region24: #{tpu_custom_call.1} parent=1 // pred_region
      %72 = dma.done [#allocation5], 16
    $region25: #{tpu_custom_call.1} parent=1 // pred_fallthru
      _
    %73 = vsyncpa [#allocation4], 1
    %74 = vsyncpa [#allocation5], 1

</llo_original>
